<compile_context>
chip_gen: v6e
topology: v6e:2x2x1
jax: 0.10.0
libtpu: 0.0.40
codegen_flags: <defaults>
</compile_context>

<pallas_src>
import functools

import jax
import jax.numpy as jnp
from jax.experimental import pallas as pl
from jax.experimental.pallas import tpu as pltpu

EPS = 1e-5
LANE = 128


def _round_up(x, m):
    return ((x + m - 1) // m) * m


def _conmlp_kernel(x_ref, w1_ref, w2_ref, w3_ref, vec_ref,
                   logp_ref, y_ref,
                   *, hp, outp, out_valid, inv_n):
    x = x_ref[...]
    vec = vec_ref[...]                       # (8, PW) packed per-feature vectors
    g1, be1 = vec[0:1, :hp], vec[1:2, :hp]
    g2, be2 = vec[2:3, :hp], vec[3:4, :hp]
    b3 = vec[4:5, :outp]

    # ---- fc1 (linear bias folded away: cancelled by BN mean subtraction) ----
    h1 = jnp.dot(x, w1_ref[...], preferred_element_type=jnp.float32)
    # ---- bn1: single-pass batch mean / biased variance ----
    m1 = jnp.sum(h1, axis=0, keepdims=True) * inv_n
    q1 = jnp.sum(h1 * h1, axis=0, keepdims=True) * inv_n
    v1 = jnp.maximum(q1 - m1 * m1, 0.0)
    h1 = (h1 - m1) * (jax.lax.rsqrt(v1 + EPS) * g1) + be1
    # ---- relu ----
    h1 = jnp.maximum(h1, 0.0)

    # ---- fc2 ----
    h2 = jnp.dot(h1, w2_ref[...], preferred_element_type=jnp.float32)
    # ---- bn2 ----
    m2 = jnp.sum(h2, axis=0, keepdims=True) * inv_n
    q2 = jnp.sum(h2 * h2, axis=0, keepdims=True) * inv_n
    v2 = jnp.maximum(q2 - m2 * m2, 0.0)
    h2 = (h2 - m2) * (jax.lax.rsqrt(v2 + EPS) * g2) + be2
    # ---- relu (second returned value `y`; padded lanes are exactly 0) ----
    y = jnp.maximum(h2, 0.0)
    y_ref[...] = y

    # ---- fc3 ----
    logits = jnp.dot(y, w3_ref[...], preferred_element_type=jnp.float32) + b3
    # ---- log_softmax over dim=1, padded lanes masked out of the reduction ----
    lane_id = jax.lax.broadcasted_iota(jnp.int32, logits.shape, 1)
    logits = jnp.where(lane_id < out_valid, logits, -1e30)
    mx = jnp.max(logits, axis=1, keepdims=True)
    s = logits - mx
    lse = jnp.log(jnp.sum(jnp.exp(s), axis=1, keepdims=True))
    logp_ref[...] = s - lse


def pack_params(raw, input_size, hidden1, hidden2, output_size):
    """Zero-pad weights to lane-dense (x128) feature dims and pack all per-feature
    vectors into a single (8, PW) f32 tile. b1/b2 are intentionally dropped."""
    assert hidden1 == hidden2, "module's bn2 width bug requires hidden1 == hidden2"
    hp = _round_up(hidden1, LANE)
    outp = _round_up(output_size, LANE)
    pw = max(hp, outp)

    def pad2(a, r, c):
        return jnp.pad(a, ((0, r - a.shape[0]), (0, c - a.shape[1])))

    w1p = pad2(raw["w1"], input_size, hp)          # (in, HP)
    w2p = pad2(raw["w2"], hp, hp)                  # (HP, HP)
    w3p = pad2(raw["w3"], hp, outp)                # (HP, OUTP)

    def row(v, width):
        return jnp.pad(v.reshape(1, -1), ((0, 0), (0, width - v.shape[-1])))

    vec = jnp.concatenate([
        row(raw["g1"], pw), row(raw["be1"], pw),
        row(raw["g2"], pw), row(raw["be2"], pw),
        row(raw["b3"], pw),
        jnp.zeros((3, pw), jnp.float32),
    ], axis=0)                                      # (8, PW) — one vreg-sized tile

    return {"w1p": w1p, "w2p": w2p, "w3p": w3p, "vec": vec,
            "hp": hp, "outp": outp, "out": output_size, "h2": hidden2}


def conmlp_two_hidden(x, packed):
    """Fused forward pass. x: (N, input_size) f32. Returns (log_probs, y)."""
    n, in_sz = x.shape
    hp, outp = packed["hp"], packed["outp"]
    out_valid, h2 = packed["out"], packed["h2"]

    vmem = pl.BlockSpec(memory_space=pltpu.MemorySpace.VMEM)
    flops = 2 * n * (in_sz * hp + hp * hp + hp * outp)
    bytes_accessed = 4 * (x.size + packed["w1p"].size + packed["w2p"].size
                          + packed["w3p"].size + packed["vec"].size
                          + n * outp + n * hp)
    cost = pl.CostEstimate(flops=flops,
                           transcendentals=n * outp + 2 * hp,
                           bytes_accessed=bytes_accessed)

    kernel = functools.partial(_conmlp_kernel, hp=hp, outp=outp,
                               out_valid=out_valid, inv_n=1.0 / n)

    logp_p, y_p = pl.pallas_call(
        kernel,
        out_shape=(
            jax.ShapeDtypeStruct((n, outp), jnp.float32),   # lane-dense log_softmax
            jax.ShapeDtypeStruct((n, hp), jnp.float32),     # lane-dense y
        ),
        in_specs=[vmem] * 5,
        out_specs=(vmem, vmem),
        compiler_params=pltpu.CompilerParams(vmem_limit_bytes=32 * 1024 * 1024),
        cost_estimate=cost,
    )(x, packed["w1p"], packed["w2p"], packed["w3p"], packed["vec"])

    return logp_p[:, :out_valid], y_p[:, :h2]


def init_params(key, input_size, hidden1, hidden2, output_size):
    """Deterministic init mirroring nn.Linear's U(-1/sqrt(fan_in), 1/sqrt(fan_in))
    and BatchNorm1d's gamma=1, beta=0. Weights stored as (in, out)."""
    ks = jax.random.split(key, 6)

    def lin(kw, kb, fan_in, fan_out):
        bound = 1.0 / jnp.sqrt(fan_in)
        w = jax.random.uniform(kw, (fan_in, fan_out), jnp.float32, -bound, bound)
        b = jax.random.uniform(kb, (fan_out,), jnp.float32, -bound, bound)
        return w, b

    w1, b1 = lin(ks[0], ks[1], input_size, hidden1)
    w2, b2 = lin(ks[2], ks[3], hidden1, hidden2)
    w3, b3 = lin(ks[4], ks[5], hidden2, output_size)
    return {
        "w1": w1, "b1": b1,
        "g1": jnp.ones((hidden1,), jnp.float32),
        "be1": jnp.zeros((hidden1,), jnp.float32),
        "w2": w2, "b2": b2,
        "g2": jnp.ones((hidden2,), jnp.float32),
        "be2": jnp.zeros((hidden2,), jnp.float32),
        "w3": w3, "b3": b3,
    }


def _reference(x, p):
    """Plain-JAX reference matching the PyTorch forward (training-mode BN)."""
    h1 = x @ p["w1"] + p["b1"]
    m1 = h1.mean(0, keepdims=True)
    v1 = ((h1 - m1) ** 2).mean(0, keepdims=True)
    h1 = jnp.maximum((h1 - m1) / jnp.sqrt(v1 + EPS) * p["g1"] + p["be1"], 0.0)
    h2 = h1 @ p["w2"] + p["b2"]
    m2 = h2.mean(0, keepdims=True)
    v2 = ((h2 - m2) ** 2).mean(0, keepdims=True)
    y = jnp.maximum((h2 - m2) / jnp.sqrt(v2 + EPS) * p["g2"] + p["be2"], 0.0)
    logits = y @ p["w3"] + p["b3"]
    return jax.nn.log_softmax(logits, axis=1), y


if __name__ == "__main__":
    # Small shapes consistent with the module: batch=8, input=16, hidden1=hidden2=32, out=8.
    batch, input_size, hidden1, hidden2, output_size = 8, 16, 32, 32, 8

    key = jax.random.PRNGKey(0)
    kx, kp = jax.random.split(key)
    x = jax.random.normal(kx, (batch, input_size), jnp.float32)
    raw = init_params(kp, input_size, hidden1, hidden2, output_size)
    packed = pack_params(raw, input_size, hidden1, hidden2, output_size)

    logp, y = conmlp_two_hidden(x, packed)
    jax.block_until_ready((logp, y))

    ref_logp, ref_y = _reference(x, raw)
    assert logp.shape == (batch, output_size) and y.shape == (batch, hidden2)
    assert jnp.allclose(logp, ref_logp, atol=1e-4, rtol=1e-4)
    assert jnp.allclose(y, ref_y, atol=1e-4, rtol=1e-4)

    print("KERNEL_OK")
</pallas_src>

<mosaic_0001>
module attributes {stable_mosaic.version = 11 : i64} {
  func.func @_conmlp_kernel(%arg0: memref<8x16xf32, #tpu.memory_space<vmem>>, %arg1: memref<16x128xf32, #tpu.memory_space<vmem>>, %arg2: memref<128x128xf32, #tpu.memory_space<vmem>>, %arg3: memref<128x128xf32, #tpu.memory_space<vmem>>, %arg4: memref<8x128xf32, #tpu.memory_space<vmem>>, %arg5: memref<8x128xf32, #tpu.memory_space<vmem>>, %arg6: memref<8x128xf32, #tpu.memory_space<vmem>>) attributes {dimension_semantics = [], scalar_prefetch = 0 : i64, scratch_operands = 0 : i64, tpu.core_type = #tpu.core_type<tc>} {
    %c0 = arith.constant 0 : index
    %c0_0 = arith.constant 0 : index
    %0 = vector.load %arg0[%c0, %c0_0] : memref<8x16xf32, #tpu.memory_space<vmem>>, vector<8x16xf32>
    %c0_1 = arith.constant 0 : index
    %c0_2 = arith.constant 0 : index
    %1 = vector.load %arg4[%c0_1, %c0_2] : memref<8x128xf32, #tpu.memory_space<vmem>>, vector<8x128xf32>
    %2 = vector.extract_strided_slice %1 {offsets = [0, 0], sizes = [1, 128], strides = [1, 1]} : vector<8x128xf32> to vector<1x128xf32>
    %3 = vector.extract_strided_slice %1 {offsets = [1, 0], sizes = [1, 128], strides = [1, 1]} : vector<8x128xf32> to vector<1x128xf32>
    %4 = vector.extract_strided_slice %1 {offsets = [2, 0], sizes = [1, 128], strides = [1, 1]} : vector<8x128xf32> to vector<1x128xf32>
    %5 = vector.extract_strided_slice %1 {offsets = [3, 0], sizes = [1, 128], strides = [1, 1]} : vector<8x128xf32> to vector<1x128xf32>
    %6 = vector.extract_strided_slice %1 {offsets = [4, 0], sizes = [1, 128], strides = [1, 1]} : vector<8x128xf32> to vector<1x128xf32>
    %c0_3 = arith.constant 0 : index
    %c0_4 = arith.constant 0 : index
    %7 = vector.load %arg1[%c0_3, %c0_4] : memref<16x128xf32, #tpu.memory_space<vmem>>, vector<16x128xf32>
    %cst = arith.constant dense<0.000000e+00> : vector<8x128xf32>
    %8 = tpu.matmul %0, %7, %cst {dimension_numbers = #tpu.dot_dimension_numbers<[1], [0], [0], [1], [0, 0, 1, 1], [], []>} : vector<8x16xf32>, vector<16x128xf32>, vector<8x128xf32> -> vector<8x128xf32>
    %cst_5 = arith.constant dense<0.000000e+00> : vector<128xf32>
    %9 = vector.multi_reduction <add>, %8, %cst_5 [0] : vector<8x128xf32> to vector<128xf32>
    %10 = vector.shape_cast %9 : vector<128xf32> to vector<1x128xf32>
    %cst_6 = arith.constant 1.250000e-01 : f32
    %11 = vector.broadcast %cst_6 : f32 to vector<1x128xf32>
    %12 = arith.mulf %10, %11 : vector<1x128xf32>
    %13 = arith.mulf %8, %8 : vector<8x128xf32>
    %cst_7 = arith.constant dense<0.000000e+00> : vector<128xf32>
    %14 = vector.multi_reduction <add>, %13, %cst_7 [0] : vector<8x128xf32> to vector<128xf32>
    %15 = vector.shape_cast %14 : vector<128xf32> to vector<1x128xf32>
    %cst_8 = arith.constant 1.250000e-01 : f32
    %16 = vector.broadcast %cst_8 : f32 to vector<1x128xf32>
    %17 = arith.mulf %15, %16 : vector<1x128xf32>
    %18 = arith.mulf %12, %12 : vector<1x128xf32>
    %19 = arith.subf %17, %18 : vector<1x128xf32>
    %cst_9 = arith.constant 0.000000e+00 : f32
    %20 = vector.broadcast %cst_9 : f32 to vector<1x128xf32>
    %21 = arith.maximumf %19, %20 : vector<1x128xf32>
    %22 = vector.broadcast %12 : vector<1x128xf32> to vector<8x128xf32>
    %23 = arith.subf %8, %22 : vector<8x128xf32>
    %cst_10 = arith.constant 9.99999974E-6 : f32
    %24 = vector.broadcast %cst_10 : f32 to vector<1x128xf32>
    %25 = arith.addf %21, %24 : vector<1x128xf32>
    %26 = math.rsqrt %25 : vector<1x128xf32>
    %27 = arith.mulf %26, %2 : vector<1x128xf32>
    %28 = vector.broadcast %27 : vector<1x128xf32> to vector<8x128xf32>
    %29 = arith.mulf %23, %28 : vector<8x128xf32>
    %30 = vector.broadcast %3 : vector<1x128xf32> to vector<8x128xf32>
    %31 = arith.addf %29, %30 : vector<8x128xf32>
    %cst_11 = arith.constant 0.000000e+00 : f32
    %32 = vector.broadcast %cst_11 : f32 to vector<8x128xf32>
    %33 = arith.maximumf %31, %32 : vector<8x128xf32>
    %c0_12 = arith.constant 0 : index
    %c0_13 = arith.constant 0 : index
    %34 = vector.load %arg2[%c0_12, %c0_13] : memref<128x128xf32, #tpu.memory_space<vmem>>, vector<128x128xf32>
    %cst_14 = arith.constant dense<0.000000e+00> : vector<8x128xf32>
    %35 = tpu.matmul %33, %34, %cst_14 {dimension_numbers = #tpu.dot_dimension_numbers<[1], [0], [0], [1], [0, 0, 1, 1], [], []>} : vector<8x128xf32>, vector<128x128xf32>, vector<8x128xf32> -> vector<8x128xf32>
    %cst_15 = arith.constant dense<0.000000e+00> : vector<128xf32>
    %36 = vector.multi_reduction <add>, %35, %cst_15 [0] : vector<8x128xf32> to vector<128xf32>
    %37 = vector.shape_cast %36 : vector<128xf32> to vector<1x128xf32>
    %cst_16 = arith.constant 1.250000e-01 : f32
    %38 = vector.broadcast %cst_16 : f32 to vector<1x128xf32>
    %39 = arith.mulf %37, %38 : vector<1x128xf32>
    %40 = arith.mulf %35, %35 : vector<8x128xf32>
    %cst_17 = arith.constant dense<0.000000e+00> : vector<128xf32>
    %41 = vector.multi_reduction <add>, %40, %cst_17 [0] : vector<8x128xf32> to vector<128xf32>
    %42 = vector.shape_cast %41 : vector<128xf32> to vector<1x128xf32>
    %cst_18 = arith.constant 1.250000e-01 : f32
    %43 = vector.broadcast %cst_18 : f32 to vector<1x128xf32>
    %44 = arith.mulf %42, %43 : vector<1x128xf32>
    %45 = arith.mulf %39, %39 : vector<1x128xf32>
    %46 = arith.subf %44, %45 : vector<1x128xf32>
    %cst_19 = arith.constant 0.000000e+00 : f32
    %47 = vector.broadcast %cst_19 : f32 to vector<1x128xf32>
    %48 = arith.maximumf %46, %47 : vector<1x128xf32>
    %49 = vector.broadcast %39 : vector<1x128xf32> to vector<8x128xf32>
    %50 = arith.subf %35, %49 : vector<8x128xf32>
    %cst_20 = arith.constant 9.99999974E-6 : f32
    %51 = vector.broadcast %cst_20 : f32 to vector<1x128xf32>
    %52 = arith.addf %48, %51 : vector<1x128xf32>
    %53 = math.rsqrt %52 : vector<1x128xf32>
    %54 = arith.mulf %53, %4 : vector<1x128xf32>
    %55 = vector.broadcast %54 : vector<1x128xf32> to vector<8x128xf32>
    %56 = arith.mulf %50, %55 : vector<8x128xf32>
    %57 = vector.broadcast %5 : vector<1x128xf32> to vector<8x128xf32>
    %58 = arith.addf %56, %57 : vector<8x128xf32>
    %cst_21 = arith.constant 0.000000e+00 : f32
    %59 = vector.broadcast %cst_21 : f32 to vector<8x128xf32>
    %60 = arith.maximumf %58, %59 : vector<8x128xf32>
    %c0_22 = arith.constant 0 : index
    %c0_23 = arith.constant 0 : index
    %61 = vector.load %arg6[%c0_22, %c0_23] : memref<8x128xf32, #tpu.memory_space<vmem>>, vector<8x128xf32>
    tpu.vector_store %arg6[%c0_22, %c0_23], %60 {strides = array<i32>} : memref<8x128xf32, #tpu.memory_space<vmem>>, vector<8x128xf32>,
    %c0_24 = arith.constant 0 : index
    %c0_25 = arith.constant 0 : index
    %62 = vector.load %arg3[%c0_24, %c0_25] : memref<128x128xf32, #tpu.memory_space<vmem>>, vector<128x128xf32>
    %cst_26 = arith.constant dense<0.000000e+00> : vector<8x128xf32>
    %63 = tpu.matmul %60, %62, %cst_26 {dimension_numbers = #tpu.dot_dimension_numbers<[1], [0], [0], [1], [0, 0, 1, 1], [], []>} : vector<8x128xf32>, vector<128x128xf32>, vector<8x128xf32> -> vector<8x128xf32>
    %64 = vector.broadcast %6 : vector<1x128xf32> to vector<8x128xf32>
    %65 = arith.addf %63, %64 : vector<8x128xf32>
    %66 = tpu.iota {dimensions = array<i32: 1>} : vector<8x128xi32>
    %c8_i32 = arith.constant 8 : i32
    %67 = vector.broadcast %c8_i32 : i32 to vector<8x128xi32>
    %68 = arith.cmpi slt, %66, %67 : vector<8x128xi32>
    %cst_27 = arith.constant -1.000000e+30 : f32
    %69 = vector.broadcast %cst_27 : f32 to vector<8x128xf32>
    %70 = arith.select %68, %65, %69 : vector<8x128xi1>, vector<8x128xf32>
    %cst_28 = arith.constant dense<0xFF800000> : vector<8xf32>
    %71 = vector.multi_reduction <maximumf>, %70, %cst_28 [1] : vector<8x128xf32> to vector<8xf32>
    %72 = vector.shape_cast %71 : vector<8xf32> to vector<8x1xf32>
    %73 = vector.broadcast %72 : vector<8x1xf32> to vector<8x128xf32>
    %74 = arith.subf %70, %73 : vector<8x128xf32>
    %75 = math.exp %74 : vector<8x128xf32>
    %cst_29 = arith.constant dense<0.000000e+00> : vector<8xf32>
    %76 = vector.multi_reduction <add>, %75, %cst_29 [1] : vector<8x128xf32> to vector<8xf32>
    %77 = vector.shape_cast %76 : vector<8xf32> to vector<8x1xf32>
    %78 = math.log %77 : vector<8x1xf32>
    %79 = vector.broadcast %78 : vector<8x1xf32> to vector<8x128xf32>
    %80 = arith.subf %74, %79 : vector<8x128xf32>
    %c0_30 = arith.constant 0 : index
    %c0_31 = arith.constant 0 : index
    %81 = vector.load %arg5[%c0_30, %c0_31] : memref<8x128xf32, #tpu.memory_space<vmem>>, vector<8x128xf32>
    tpu.vector_store %arg5[%c0_30, %c0_31], %80 {strides = array<i32>} : memref<8x128xf32, #tpu.memory_space<vmem>>, vector<8x128xf32>,
    return
  }
}

</mosaic_0001>

<llo_original>
// kernel: tpu_custom_call.1
$region0: #{tpu_custom_call.1}
  #allocation0 [shape = 'u32[]', space=smem, size = 0x4, offset = 0x4, fixed_abs, tag = 'smem constant byte address 0x4 - core index']
  #allocation1 [shape = 'u32[144,128]{1,0:T(1,128)}', space=vmem, size = 0x12000, scoped, tag = 'internal scratch']
  %s0 = inlined_call_operand.hbm [shape: f32[8,16], index: 0, kind: input, shape index: {}]
  %s1 = inlined_call_operand.hbm [shape: f32[16,128], index: 1, kind: input, shape index: {}]
  %s2 = inlined_call_operand.hbm [shape: f32[128,128], index: 2, kind: input, shape index: {}]
  %s3 = inlined_call_operand.hbm [shape: f32[128,128], index: 3, kind: input, shape index: {}]
  %s4 = inlined_call_operand.hbm [shape: f32[8,128], index: 4, kind: input, shape index: {}]
  %s5 = inlined_call_operand.hbm [shape: f32[8,128], index: 5, kind: output, shape index: {0}]
  %s6 = inlined_call_operand.hbm [shape: f32[8,128], index: 6, kind: output, shape index: {1}]
  %7 = xla_tuple %s5, %s6
  %s8 = sld [smem:[#allocation0]]
  $region58: #{tpu_custom_call.1} parent=0
    _
  %s10 = ssub.s32 1, %s8
  %s11 = scalar_select 0, %s10, %s8
  $region1: #{tpu_custom_call.1} parent=0
    #allocation2 [shape = 'u8[4096]{0}', space=vmem, size = 0x1000, scoped, tag = 'input window, operand 0, single buffered']
    #allocation3 [shape = 's32[1]{0}', space=sflag, size = 0x4, scoped, tag = 'scoped memory for tpu_custom_call.1']
    #allocation4 [shape = 's32[1]{0}', space=sflag, size = 0x4, scoped, tag = 'scoped memory for tpu_custom_call.1']
    #allocation5 [shape = 'u8[8192]{0}', space=vmem, size = 0x2000, scoped, tag = 'input window, operand 1, single buffered']
    #allocation6 [shape = 's32[1]{0}', space=sflag, size = 0x4, scoped, tag = 'scoped memory for tpu_custom_call.1']
    #allocation7 [shape = 'u8[65536]{0}', space=vmem, size = 0x10000, scoped, tag = 'input window, operand 2, single buffered']
    #allocation8 [shape = 'u8[65536]{0}', space=vmem, size = 0x10000, scoped, tag = 'input window, operand 3, single buffered']
    #allocation9 [shape = 's32[1]{0}', space=sflag, size = 0x4, scoped, tag = 'scoped memory for tpu_custom_call.1']
    #allocation10 [shape = 'u8[4096]{0}', space=vmem, size = 0x1000, scoped, tag = 'input window, operand 4, single buffered']
    #allocation11 [shape = 'u8[4096]{0}', space=vmem, size = 0x1000, scoped, tag = 'output window, operand 0, single buffered']
    #allocation12 [shape = 'u8[4096]{0}', space=vmem, size = 0x1000, scoped, tag = 'output window, operand 1, single buffered']
    #allocation13 [shape = 's32[1]{0}', space=sflag, size = 0x4, scoped, tag = 'scoped memory for tpu_custom_call.1']
    %12 = vsyncpa [#allocation3], 0
    %13 = vsyncpa [#allocation6], 0
    %14 = vsyncpa [#allocation9], 0
    %15 = vsyncpa [#allocation4], 0
    %16 = vsyncpa [#allocation13], 0
    // Predicated region
    $region2: #{tpu_custom_call.1} parent=1 // pred_check
      _
    $region3: #{tpu_custom_call.1} parent=1 // pred_check_branch
      %18 = sbr.rel (0) target = $region5
    $region4: #{tpu_custom_call.1} parent=1 // pred_region
      %s20 = ssub.s32 128, 128
      %21 = vsyncadd [#allocation3], %s20
      %s23 = sshll.u32 [#allocation2], 4
      %s24 = int_to_ptr.vmem [resolvable:$true] %s23
      %26 = dma.hbm_to_vmem [thread:$0]  %s0, 128, %s24, [#allocation3]
    $region5: #{tpu_custom_call.1} parent=1 // pred_fallthru
      _
    // Predicated region
    $region6: #{tpu_custom_call.1} parent=1 // pred_check
      _
    $region7: #{tpu_custom_call.1} parent=1 // pred_check_branch
      %28 = sbr.rel (0) target = $region9
    $region8: #{tpu_custom_call.1} parent=1 // pred_region
      %s30 = ssub.s32 256, 256
      %31 = vsyncadd [#allocation6], %s30
      %s32 = sshll.u32 [#allocation5], 4
      %s33 = int_to_ptr.vmem [resolvable:$true] %s32
      %38 = dma.hbm_to_vmem [thread:$0]  %s1, 256, %s33, [#allocation6], 128, 128, 8
    $region9: #{tpu_custom_call.1} parent=1 // pred_fallthru
      _
    // Predicated region
    $region10: #{tpu_custom_call.1} parent=1 // pred_check
      _
    $region11: #{tpu_custom_call.1} parent=1 // pred_check_branch
      %40 = sbr.rel (0) target = $region13
    $region12: #{tpu_custom_call.1} parent=1 // pred_region
      %s42 = ssub.s32 2048, 2048
      %43 = vsyncadd [#allocation6], %s42
      %s44 = sshll.u32 [#allocation7], 4
      %s45 = int_to_ptr.vmem [resolvable:$true] %s44
      %50 = dma.hbm_to_vmem [thread:$0]  %s2, 2048, %s45, [#allocation6], 128, 128, 8
    $region13: #{tpu_custom_call.1} parent=1 // pred_fallthru
      _
    // Predicated region
    $region14: #{tpu_custom_call.1} parent=1 // pred_check
      _
    $region15: #{tpu_custom_call.1} parent=1 // pred_check_branch
      %52 = sbr.rel (0) target = $region17
    $region16: #{tpu_custom_call.1} parent=1 // pred_region
      %s54 = ssub.s32 2048, 2048
      %55 = vsyncadd [#allocation9], %s54
      %s56 = sshll.u32 [#allocation8], 4
      %s57 = int_to_ptr.vmem [resolvable:$true] %s56
      %62 = dma.hbm_to_vmem [thread:$0]  %s3, 2048, %s57, [#allocation9], 128, 128, 8
    $region17: #{tpu_custom_call.1} parent=1 // pred_fallthru
      _
    // Predicated region
    $region18: #{tpu_custom_call.1} parent=1 // pred_check
      _
    $region19: #{tpu_custom_call.1} parent=1 // pred_check_branch
      %64 = sbr.rel (0) target = $region21
    $region20: #{tpu_custom_call.1} parent=1 // pred_region
      %s66 = ssub.s32 128, 128
      %67 = vsyncadd [#allocation9], %s66
      %s69 = sshll.u32 [#allocation10], 4
      %s70 = int_to_ptr.vmem [resolvable:$true] %s69
      %72 = dma.hbm_to_vmem [thread:$0]  %s4, 128, %s70, [#allocation9]
    $region21: #{tpu_custom_call.1} parent=1 // pred_fallthru
      _
    // Predicated region
    $region22: #{tpu_custom_call.1} parent=1 // pred_check
      _
    $region23: #{tpu_custom_call.1} parent=1 // pred_check_branch
      %74 = sbr.rel (0) target = $region25
    $region24: #{tpu_custom_call.1} parent=1 // pred_region
      %75 = dma.done [#allocation3], 128
    $region25: #{tpu_custom_call.1} parent=1 // pred_fallthru
      _
    // Predicated region
    $region26: #{tpu_custom_call.1} parent=1 // pred_check
      _
    $region27: #{tpu_custom_call.1} parent=1 // pred_check_branch
      %77 = sbr.rel (0) target = $region29
    $region28: #{tpu_custom_call.1} parent=1 // pred_region
      %78 = dma.done [#allocation6], 256
    $region29: #{tpu_custom_call.1} parent=1 // pred_fallthru
      _
    // Predicated region
    $region30: #{tpu_custom_call.1} parent=1 // pred_check
      _
    $region31: #{tpu_custom_call.1} parent=1 // pred_check_branch
      %80 = sbr.rel (0) target = $region33
    $region32: #{tpu_custom_call.1} parent=1 // pred_region
      %81 = dma.done [#allocation6], 2048
    $region33: #{tpu_custom_call.1} parent=1 // pred_fallthru
      _
    // Predicated region
    $region34: #{tpu_custom_call.1} parent=1 // pred_check
      _
    $region35: #{tpu_custom_call.1} parent=1 // pred_check_branch
      %83 = sbr.rel (0) target = $region37
    $region36: #{tpu_custom_call.1} parent=1 // pred_region
      %84 = dma.done [#allocation9], 2048
    $region37: #{tpu_custom_call.1} parent=1 // pred_fallthru
      _
    // Predicated region
    $region38: #{tpu_custom_call.1} parent=1 // pred_check
      _
    $region39: #{tpu_custom_call.1} parent=1 // pred_check_branch
      %86 = sbr.rel (0) target = $region41
    $region40: #{tpu_custom_call.1} parent=1 // pred_region
      %87 = dma.done [#allocation9], 128
    $region41: #{tpu_custom_call.1} parent=1 // pred_fallthru
      _
    %v88 = vld [vmem:[#allocation2] sm:$0xff]
    %v89 = vld [vmem:[#allocation10] sm:$0xff]
    %v90 = vld [vmem:[#allocation5] sm:$0xff]
    %v91 = vld [vmem:[#allocation5 + $0x8] sm:$0xff]
    %vm92 = vcmask 130048
    %v94 = vsel %vm92, %v88, 0
    %96 = vmatprep.subr.mxu0 0.0
    %97 = vmatpush1.msra.mxu0 0.0
    %98 = vmatprep.subr.mxu0 0.0
    %99 = vmatpush1.msra.mxu0 0.0
    %100 = vmatprep.subr.mxu0 0.0
    %101 = vmatpush1.msra.mxu0 0.0
    %102 = vmatprep.subr.mxu0 0.0
    %103 = vmatpush1.msra.mxu0 0.0
    %104 = vmatprep.subr.mxu0 0.0
    %105 = vmatpush1.msra.mxu0 0.0
    %106 = vmatprep.subr.mxu0 0.0
    %107 = vmatpush1.msra.mxu0 0.0
    %108 = vmatprep.subr.mxu0 0.0
    %109 = vmatpush1.msra.mxu0 0.0
    %110 = vmatprep.subr.mxu0 0.0
    %111 = vmatpush1.msra.mxu0 0.0
    %112 = vmatprep.subr.mxu0 0.0
    %113 = vmatpush1.msra.mxu0 0.0
    %114 = vmatprep.subr.mxu0 0.0
    %115 = vmatpush1.msra.mxu0 0.0
    %116 = vmatprep.subr.mxu0 0.0
    %117 = vmatpush1.msra.mxu0 0.0
    %118 = vmatprep.subr.mxu0 0.0
    %119 = vmatpush1.msra.mxu0 0.0
    %120 = vmatprep.subr.mxu0 0.0
    %121 = vmatpush1.msra.mxu0 0.0
    %122 = vmatprep.subr.mxu0 0.0
    %123 = vmatpush1.msra.mxu0 0.0
    %124 = vmatprep.subr.mxu0 0.0
    %125 = vmatpush1.msra.mxu0 %v91
    %126 = vmatprep.subr.mxu0 0.0
    %127 = vmatpush1.msra.mxu0 %v90
    %128 = vmatprep.subr.mxu0 0.0
    %129 = vmatpush2.msra.mxu0 0.0
    %130 = vmatprep.subr.mxu0 0.0
    %131 = vmatpush2.msra.mxu0 0.0
    %132 = vmatprep.subr.mxu0 0.0
    %133 = vmatpush2.msra.mxu0 0.0
    %134 = vmatprep.subr.mxu0 0.0
    %135 = vmatpush2.msra.mxu0 0.0
    %136 = vmatprep.subr.mxu0 0.0
    %137 = vmatpush2.msra.mxu0 0.0
    %138 = vmatprep.subr.mxu0 0.0
    %139 = vmatpush2.msra.mxu0 0.0
    %140 = vmatprep.subr.mxu0 0.0
    %141 = vmatpush2.msra.mxu0 0.0
    %142 = vmatprep.subr.mxu0 0.0
    %143 = vmatpush2.msra.mxu0 0.0
    %144 = vmatprep.subr.mxu0 0.0
    %145 = vmatpush2.msra.mxu0 0.0
    %146 = vmatprep.subr.mxu0 0.0
    %147 = vmatpush2.msra.mxu0 0.0
    %148 = vmatprep.subr.mxu0 0.0
    %149 = vmatpush2.msra.mxu0 0.0
    %150 = vmatprep.subr.mxu0 0.0
    %151 = vmatpush2.msra.mxu0 0.0
    %152 = vmatprep.subr.mxu0 0.0
    %153 = vmatpush2.msra.mxu0 0.0
    %154 = vmatprep.subr.mxu0 0.0
    %155 = vmatpush2.msra.mxu0 0.0
    %156 = vmatprep.subr.mxu0 0.0
    %157 = vmatpush2.msra.mxu0 0.0
    %158 = vmatprep.subr.mxu0 0.0
    %159 = vmatpush2.msra.mxu0 0.0
    %160 = vmatprep.mubr.f32.mxu0 0.0
    %161 = vmatmul.mubr.f32.gmra.mxu0 %v94
    %v162 = vpop.f32.mrf.mxu0
    %v163 = vadd.f32 0.0, %v162
    %v164 = vpop.f32.mrf.mxu0
    %165 = vdwg.mxu0
    %v166 = vrot.slane %v163, 4
    %v167 = vadd.f32 %v163, %v166
    %v168 = vrot.slane %v167, 2
    %v169 = vadd.f32 %v167, %v168
    %v170 = vrot.slane %v169, 1
    %v171 = vadd.f32 %v169, %v170
    %v172 = vmul.f32 %v171, 0.125
    %v173 = vmul.f32 %v163, %v163
    %v174 = vrot.slane %v173, 4
    %v175 = vadd.f32 %v173, %v174
    %v176 = vrot.slane %v175, 2
    %v177 = vadd.f32 %v175, %v176
    %v178 = vrot.slane %v177, 1
    %v179 = vadd.f32 %v177, %v178
    %v180 = vmul.f32 %v179, 0.125
    %v181 = vmul.f32 %v172, %v172
    %v182 = vsub.f32 %v180, %v181
    %v183 = vmax.f32 %v182, 0.0
    %v184 = vsub.f32 %v163, %v172
    %v185 = vadd.f32 %v183, 1e-05
    %v186 = vrsqrt.pop %v185
    %v187 = vmul.f32 %v186, %v89
    %v188 = vlaneseq
    %v189 = vshrl.u32 %v188, 7
    %v190 = vsub.s32 0, %v189
    %v191 = vrot.slane %v187, %v190
    %v192 = vmul.f32 %v184, %v191
    %v193 = vlaneseq
    %v194 = vshrl.u32 %v193, 7
    %v195 = vsub.s32 1, %v194
    %v196 = vrot.slane %v89, %v195
    %v197 = vadd.f32 %v192, %v196
    %v198 = vmax.f32 %v197, 0.0
    %v199 = vld [vmem:[#allocation7] sm:$0xff]
    %v200 = vld [vmem:[#allocation7 + $0x8] sm:$0xff]
    %v201 = vld [vmem:[#allocation7 + $0x10] sm:$0xff]
    %v202 = vld [vmem:[#allocation7 + $0x18] sm:$0xff]
    %v203 = vld [vmem:[#allocation7 + $0x20] sm:$0xff]
    %v204 = vld [vmem:[#allocation7 + $0x28] sm:$0xff]
    %v205 = vld [vmem:[#allocation7 + $0x30] sm:$0xff]
    %v206 = vld [vmem:[#allocation7 + $0x38] sm:$0xff]
    %v207 = vld [vmem:[#allocation7 + $0x40] sm:$0xff]
    %v208 = vld [vmem:[#allocation7 + $0x48] sm:$0xff]
    %v209 = vld [vmem:[#allocation7 + $0x50] sm:$0xff]
    %v210 = vld [vmem:[#allocation7 + $0x58] sm:$0xff]
    %v211 = vld [vmem:[#allocation7 + $0x60] sm:$0xff]
    %v212 = vld [vmem:[#allocation7 + $0x68] sm:$0xff]
    %v213 = vld [vmem:[#allocation7 + $0x70] sm:$0xff]
    %v214 = vld [vmem:[#allocation7 + $0x78] sm:$0xff]
    %215 = vmatprep.subr.mxu0 0.0
    %216 = vmatpush1.msra.mxu0 %v214
    %217 = vmatprep.subr.mxu0 0.0
    %218 = vmatpush1.msra.mxu0 %v213
    %219 = vmatprep.subr.mxu0 0.0
    %220 = vmatpush1.msra.mxu0 %v212
    %221 = vmatprep.subr.mxu0 0.0
    %222 = vmatpush1.msra.mxu0 %v211
    %223 = vmatprep.subr.mxu0 0.0
    %224 = vmatpush1.msra.mxu0 %v210
    %225 = vmatprep.subr.mxu0 0.0
    %226 = vmatpush1.msra.mxu0 %v209
    %227 = vmatprep.subr.mxu0 0.0
    %228 = vmatpush1.msra.mxu0 %v208
    %229 = vmatprep.subr.mxu0 0.0
    %230 = vmatpush1.msra.mxu0 %v207
    %231 = vmatprep.subr.mxu0 0.0
    %232 = vmatpush1.msra.mxu0 %v206
    %233 = vmatprep.subr.mxu0 0.0
    %234 = vmatpush1.msra.mxu0 %v205
    %235 = vmatprep.subr.mxu0 0.0
    %236 = vmatpush1.msra.mxu0 %v204
    %237 = vmatprep.subr.mxu0 0.0
    %238 = vmatpush1.msra.mxu0 %v203
    %239 = vmatprep.subr.mxu0 0.0
    %240 = vmatpush1.msra.mxu0 %v202
    %241 = vmatprep.subr.mxu0 0.0
    %242 = vmatpush1.msra.mxu0 %v201
    %243 = vmatprep.subr.mxu0 0.0
    %244 = vmatpush1.msra.mxu0 %v200
    %245 = vmatprep.subr.mxu0 0.0
    %246 = vmatpush1.msra.mxu0 %v199
    %247 = vmatprep.subr.mxu0 0.0
    %248 = vmatpush2.msra.mxu0 0.0
    %249 = vmatprep.subr.mxu0 0.0
    %250 = vmatpush2.msra.mxu0 0.0
    %251 = vmatprep.subr.mxu0 0.0
    %252 = vmatpush2.msra.mxu0 0.0
    %253 = vmatprep.subr.mxu0 0.0
    %254 = vmatpush2.msra.mxu0 0.0
    %255 = vmatprep.subr.mxu0 0.0
    %256 = vmatpush2.msra.mxu0 0.0
    %257 = vmatprep.subr.mxu0 0.0
    %258 = vmatpush2.msra.mxu0 0.0
    %259 = vmatprep.subr.mxu0 0.0
    %260 = vmatpush2.msra.mxu0 0.0
    %261 = vmatprep.subr.mxu0 0.0
    %262 = vmatpush2.msra.mxu0 0.0
    %263 = vmatprep.subr.mxu0 0.0
    %264 = vmatpush2.msra.mxu0 0.0
    %265 = vmatprep.subr.mxu0 0.0
    %266 = vmatpush2.msra.mxu0 0.0
    %267 = vmatprep.subr.mxu0 0.0
    %268 = vmatpush2.msra.mxu0 0.0
    %269 = vmatprep.subr.mxu0 0.0
    %270 = vmatpush2.msra.mxu0 0.0
    %271 = vmatprep.subr.mxu0 0.0
    %272 = vmatpush2.msra.mxu0 0.0
    %273 = vmatprep.subr.mxu0 0.0
    %274 = vmatpush2.msra.mxu0 0.0
    %275 = vmatprep.subr.mxu0 0.0
    %276 = vmatpush2.msra.mxu0 0.0
    %277 = vmatprep.subr.mxu0 0.0
    %278 = vmatpush2.msra.mxu0 0.0
    %279 = vmatprep.mubr.f32.mxu0 0.0
    %280 = vmatmul.mubr.f32.gmra.mxu0 %v198
    %v281 = vpop.f32.mrf.mxu0
    %v282 = vadd.f32 0.0, %v281
    %v283 = vpop.f32.mrf.mxu0
    %284 = vdwg.mxu0
    %v285 = vrot.slane %v282, 4
    %v286 = vadd.f32 %v282, %v285
    %v287 = vrot.slane %v286, 2
    %v288 = vadd.f32 %v286, %v287
    %v289 = vrot.slane %v288, 1
    %v290 = vadd.f32 %v288, %v289
    %v291 = vmul.f32 %v290, 0.125
    %v292 = vmul.f32 %v282, %v282
    %v293 = vrot.slane %v292, 4
    %v294 = vadd.f32 %v292, %v293
    %v295 = vrot.slane %v294, 2
    %v296 = vadd.f32 %v294, %v295
    %v297 = vrot.slane %v296, 1
    %v298 = vadd.f32 %v296, %v297
    %v299 = vmul.f32 %v298, 0.125
    %v300 = vmul.f32 %v291, %v291
    %v301 = vsub.f32 %v299, %v300
    %v302 = vmax.f32 %v301, 0.0
    %v303 = vsub.f32 %v282, %v291
    %v304 = vadd.f32 %v302, 1e-05
    %v305 = vrsqrt.pop %v304
    %v306 = vmul.f32 %v305, %v89
    %v307 = vlaneseq
    %v308 = vshrl.u32 %v307, 7
    %v309 = vsub.s32 2, %v308
    %v310 = vrot.slane %v306, %v309
    %v311 = vmul.f32 %v303, %v310
    %v312 = vlaneseq
    %v313 = vshrl.u32 %v312, 7
    %v314 = vsub.s32 3, %v313
    %v315 = vrot.slane %v89, %v314
    %v316 = vadd.f32 %v311, %v315
    %v317 = vmax.f32 %v316, 0.0
    %318 = vst [vmem:[#allocation12] sm:$0xff] %v317
    %v319 = vld [vmem:[#allocation8] sm:$0xff]
    %v320 = vld [vmem:[#allocation8 + $0x8] sm:$0xff]
    %v321 = vld [vmem:[#allocation8 + $0x10] sm:$0xff]
    %v322 = vld [vmem:[#allocation8 + $0x18] sm:$0xff]
    %v323 = vld [vmem:[#allocation8 + $0x20] sm:$0xff]
    %v324 = vld [vmem:[#allocation8 + $0x28] sm:$0xff]
    %v325 = vld [vmem:[#allocation8 + $0x30] sm:$0xff]
    %v326 = vld [vmem:[#allocation8 + $0x38] sm:$0xff]
    %v327 = vld [vmem:[#allocation8 + $0x40] sm:$0xff]
    %v328 = vld [vmem:[#allocation8 + $0x48] sm:$0xff]
    %v329 = vld [vmem:[#allocation8 + $0x50] sm:$0xff]
    %v330 = vld [vmem:[#allocation8 + $0x58] sm:$0xff]
    %v331 = vld [vmem:[#allocation8 + $0x60] sm:$0xff]
    %v332 = vld [vmem:[#allocation8 + $0x68] sm:$0xff]
    %v333 = vld [vmem:[#allocation8 + $0x70] sm:$0xff]
    %v334 = vld [vmem:[#allocation8 + $0x78] sm:$0xff]
    %v335 = vlaneseq
    %v336 = vshrl.u32 %v335, 7
    %v337 = vsub.s32 4, %v336
    %v338 = vrot.slane %v89, %v337
    %339 = vmatprep.subr.mxu0 0.0
    %340 = vmatpush1.msra.mxu0 %v334
    %341 = vmatprep.subr.mxu0 0.0
    %342 = vmatpush1.msra.mxu0 %v333
    %343 = vmatprep.subr.mxu0 0.0
    %344 = vmatpush1.msra.mxu0 %v332
    %345 = vmatprep.subr.mxu0 0.0
    %346 = vmatpush1.msra.mxu0 %v331
    %347 = vmatprep.subr.mxu0 0.0
    %348 = vmatpush1.msra.mxu0 %v330
    %349 = vmatprep.subr.mxu0 0.0
    %350 = vmatpush1.msra.mxu0 %v329
    %351 = vmatprep.subr.mxu0 0.0
    %352 = vmatpush1.msra.mxu0 %v328
    %353 = vmatprep.subr.mxu0 0.0
    %354 = vmatpush1.msra.mxu0 %v327
    %355 = vmatprep.subr.mxu0 0.0
    %356 = vmatpush1.msra.mxu0 %v326
    %357 = vmatprep.subr.mxu0 0.0
    %358 = vmatpush1.msra.mxu0 %v325
    %359 = vmatprep.subr.mxu0 0.0
    %360 = vmatpush1.msra.mxu0 %v324
    %361 = vmatprep.subr.mxu0 0.0
    %362 = vmatpush1.msra.mxu0 %v323
    %363 = vmatprep.subr.mxu0 0.0
    %364 = vmatpush1.msra.mxu0 %v322
    %365 = vmatprep.subr.mxu0 0.0
    %366 = vmatpush1.msra.mxu0 %v321
    %367 = vmatprep.subr.mxu0 0.0
    %368 = vmatpush1.msra.mxu0 %v320
    %369 = vmatprep.subr.mxu0 0.0
    %370 = vmatpush1.msra.mxu0 %v319
    %371 = vmatprep.subr.mxu0 0.0
    %372 = vmatpush2.msra.mxu0 0.0
    %373 = vmatprep.subr.mxu0 0.0
    %374 = vmatpush2.msra.mxu0 0.0
    %375 = vmatprep.subr.mxu0 0.0
    %376 = vmatpush2.msra.mxu0 0.0
    %377 = vmatprep.subr.mxu0 0.0
    %378 = vmatpush2.msra.mxu0 0.0
    %379 = vmatprep.subr.mxu0 0.0
    %380 = vmatpush2.msra.mxu0 0.0
    %381 = vmatprep.subr.mxu0 0.0
    %382 = vmatpush2.msra.mxu0 0.0
    %383 = vmatprep.subr.mxu0 0.0
    %384 = vmatpush2.msra.mxu0 0.0
    %385 = vmatprep.subr.mxu0 0.0
    %386 = vmatpush2.msra.mxu0 0.0
    %387 = vmatprep.subr.mxu0 0.0
    %388 = vmatpush2.msra.mxu0 0.0
    %389 = vmatprep.subr.mxu0 0.0
    %390 = vmatpush2.msra.mxu0 0.0
    %391 = vmatprep.subr.mxu0 0.0
    %392 = vmatpush2.msra.mxu0 0.0
    %393 = vmatprep.subr.mxu0 0.0
    %394 = vmatpush2.msra.mxu0 0.0
    %395 = vmatprep.subr.mxu0 0.0
    %396 = vmatpush2.msra.mxu0 0.0
    %397 = vmatprep.subr.mxu0 0.0
    %398 = vmatpush2.msra.mxu0 0.0
    %399 = vmatprep.subr.mxu0 0.0
    %400 = vmatpush2.msra.mxu0 0.0
    %401 = vmatprep.subr.mxu0 0.0
    %402 = vmatpush2.msra.mxu0 0.0
    %403 = vmatprep.mubr.f32.mxu0 0.0
    %404 = vmatmul.mubr.f32.gmra.mxu0 %v317
    %v405 = vpop.f32.mrf.mxu0
    %v406 = vadd.f32 %v338, %v405
    %v407 = vpop.f32.mrf.mxu0
    %408 = vdwg.mxu0
    %v409 = vlaneseq
    %v410 = vand.u32 %v409, 127
    %vm411 = vcmp.lt.s32.totalorder %v410, 8
    %v412 = vsel %vm411, %v406, -1e+30
    %413 = vmax.xlane.f32.xlu0 %v412
    %v414 = vpop.xlane.xlu0 %413
    %v415 = vsub.f32 %v412, %v414
    %v416 = vmul.f32 %v415, 1.442695
    %v417 = vpow.pop %v416
    %418 = vadd.xlane.f32.xlu0 %v417
    %v419 = vpop.xlane.xlu0 %418
    %v420 = vlog2.pop %v419
    %v421 = vmul.f32 %v420, 0.6931472
    %v422 = vsub.f32 %v415, %v421
    %423 = vst [vmem:[#allocation11] sm:$0xff] %v422
    // Predicated region
    $region42: #{tpu_custom_call.1} parent=1 // pred_check
      _
    $region43: #{tpu_custom_call.1} parent=1 // pred_check_branch
      %425 = sbr.rel (0) target = $region45
    $region44: #{tpu_custom_call.1} parent=1 // pred_region
      %s427 = ssub.s32 128, 128
      %428 = vsyncadd [#allocation4], %s427
      %s430 = sshll.u32 [#allocation11], 4
      %s431 = int_to_ptr.vmem [resolvable:$true] %s430
      %433 = dma.vmem_to_hbm [thread:$0]  %s431, 128, %s5, [#allocation4]
    $region45: #{tpu_custom_call.1} parent=1 // pred_fallthru
      _
    // Predicated region
    $region46: #{tpu_custom_call.1} parent=1 // pred_check
      _
    $region47: #{tpu_custom_call.1} parent=1 // pred_check_branch
      %435 = sbr.rel (0) target = $region49
    $region48: #{tpu_custom_call.1} parent=1 // pred_region
      %s437 = ssub.s32 128, 128
      %438 = vsyncadd [#allocation13], %s437
      %s440 = sshll.u32 [#allocation12], 4
      %s441 = int_to_ptr.vmem [resolvable:$true] %s440
      %443 = dma.vmem_to_hbm [thread:$0]  %s441, 128, %s6, [#allocation13]
    $region49: #{tpu_custom_call.1} parent=1 // pred_fallthru
      _
    // Predicated region
    $region50: #{tpu_custom_call.1} parent=1 // pred_check
      _
    $region51: #{tpu_custom_call.1} parent=1 // pred_check_branch
      %445 = sbr.rel (0) target = $region53
    $region52: #{tpu_custom_call.1} parent=1 // pred_region
      %446 = dma.done [#allocation4], 128
    $region53: #{tpu_custom_call.1} parent=1 // pred_fallthru
      _
    // Predicated region
    $region54: #{tpu_custom_call.1} parent=1 // pred_check
      _
    $region55: #{tpu_custom_call.1} parent=1 // pred_check_branch
      %448 = sbr.rel (0) target = $region57
    $region56: #{tpu_custom_call.1} parent=1 // pred_region
      %449 = dma.done [#allocation13], 128
    $region57: #{tpu_custom_call.1} parent=1 // pred_fallthru
      _
    %450 = vsyncpa [#allocation3], 1
    %451 = vsyncpa [#allocation6], 1
    %452 = vsyncpa [#allocation9], 1
    %453 = vsyncpa [#allocation4], 1
    %454 = vsyncpa [#allocation13], 1

</llo_original>
